<compile_context>
chip_gen: v7x
topology: tpu7x:2x2x1
jax: 0.10.0
libtpu: 0.0.40
codegen_flags: <defaults>
</compile_context>

<pallas_src>
import functools

import jax
import jax.numpy as jnp
from jax.experimental import pallas as pl
from jax.experimental.pallas import tpu as pltpu

VMEM = pl.BlockSpec(memory_space=pltpu.MemorySpace.VMEM)


# ----------------------------------------------------------------------------
# Fused kernel: projection -> sigmoid -> in-kernel top-k -> gather/scale
# ----------------------------------------------------------------------------

def _graph_pool_kernel(a_ref, x_ref, w_ref, b_ref,
                       a_out_ref, x_out_ref, idx_ref):
    n = a_ref.shape[0]
    kk = a_out_ref.shape[0]

    # Load in native dtype, compute in f32 (v5e has no bf16 VPU path).
    a = a_ref[...].astype(jnp.float32)          # (n, n)
    x = x_ref[...].astype(jnp.float32)          # (n, d)
    w = w_ref[...].astype(jnp.float32)          # (1, d)
    b = b_ref[...].astype(jnp.float32)          # (1, 1)

    # scores = sigmoid((X @ W^T + b) / 100) as an (n, 1) column.
    # VPU row-reduction (no N=1 MXU matmul); exp goes to the EUP slot.
    raw = jnp.sum(x * w, axis=1, keepdims=True) + b        # (n, 1)
    s_col = jax.nn.sigmoid(raw * 0.01)                     # (n, 1)
    s_row = jnp.transpose(s_col)                           # (1, n) — same bits

    # In-kernel top-k via pairwise ranking.
    #   beats[j, i] = node j is ordered before node i
    #               = (s_j > s_i) | (s_j == s_i and j < i)   (torch/lax tie-break)
    #   rank_i      = sum_j beats[j, i]     -> a permutation of 0..n-1
    jj = jax.lax.broadcasted_iota(jnp.int32, (n, n), 0)     # j (sublane)
    ii = jax.lax.broadcasted_iota(jnp.int32, (n, n), 1)     # i (lane)
    beats = (s_col > s_row) | ((s_col == s_row) & (jj < ii))
    rank = jnp.sum(beats.astype(jnp.int32), axis=0, keepdims=True)   # (1, n)

    # One-hot selection matrix: P[r, i] = (rank_i == r), r in [0, kk).
    # Rows are exact one-hots (ranks are a permutation) so idx entries are
    # distinct and P-matmuls reproduce X[idx] / A[idx][:, idx] exactly.
    rr = jax.lax.broadcasted_iota(jnp.int32, (kk, n), 0)
    p_bool = rr == rank                                     # (kk, n)
    p = p_bool.astype(jnp.float32)

    # idx[r] = selected node id at rank r (descending score order).
    col_ids = jax.lax.broadcasted_iota(jnp.int32, (kk, n), 1)
    idx_ref[...] = jnp.sum(jnp.where(p_bool, col_ids, 0), axis=1, keepdims=True)

    # One MXU pass for both selections that share P:
    #   P @ [A | X*s]  ->  PA = A[idx, :]   and   new_X = X[idx] * values[:,None]
    xs = x * s_col                                          # (n, d)
    sel = jnp.dot(p, jnp.concatenate([a, xs], axis=1),
                  preferred_element_type=jnp.float32)       # (kk, n + d)
    pa = sel[:, :n]                                         # (kk, n)
    x_out_ref[...] = sel[:, n:].astype(x_out_ref.dtype)     # (kk, d)

    # new_A = (P @ A) @ P^T — contract pa dim 1 with p dim 1 (skip transpose).
    a_out_ref[...] = jax.lax.dot_general(
        pa, p, (((1,), (1,)), ((), ())),
        preferred_element_type=jnp.float32).astype(a_out_ref.dtype)


# ----------------------------------------------------------------------------
# Forward wrapper: single jit, single pallas_call
# ----------------------------------------------------------------------------

@functools.partial(jax.jit, static_argnames=("k",))
def graph_pool(A, X, w, b, *, k):
    """Pallas GraphPool forward. w: (1, in_dim) = nn.Linear weight, b: (1,)."""
    n, d = X.shape
    kk = int(k * n)
    if kk < 1 or kk > n:
        raise ValueError(f"int(k * n) = {kk} must be in [1, {n}]")

    w_row = w.reshape(1, d)
    b11 = b.reshape(1, 1)

    a_new, x_new, idx2d = pl.pallas_call(
        _graph_pool_kernel,
        out_shape=(jax.ShapeDtypeStruct((kk, kk), A.dtype),
                   jax.ShapeDtypeStruct((kk, d), X.dtype),
                   jax.ShapeDtypeStruct((kk, 1), jnp.int32)),
        in_specs=[VMEM, VMEM, VMEM, VMEM],
        out_specs=(VMEM, VMEM, VMEM),
    )(A, X, w_row, b11)

    return a_new, x_new, idx2d[:, 0]


# ----------------------------------------------------------------------------
# Pure-JAX reference (mirrors the PyTorch forward) for a correctness check
# ----------------------------------------------------------------------------

def graph_pool_reference(A, X, w, b, k):
    scores = jax.nn.sigmoid((X @ w.reshape(-1, 1) + b.reshape(1, 1)) / 100.0)[:, 0]
    kk = int(k * A.shape[0])
    values, idx = jax.lax.top_k(scores, kk)
    new_X = X[idx, :] * values[:, None]
    A2 = A[idx, :][:, idx]
    return A2, new_X, idx


# ----------------------------------------------------------------------------
# Main
# ----------------------------------------------------------------------------

if __name__ == "__main__":
    n, in_dim, k = 16, 32, 0.5           # -> kk = 8 pooled nodes

    key = jax.random.PRNGKey(0)
    ka, kx, kw, kb = jax.random.split(key, 4)

    u = jax.random.uniform(ka, (n, n), jnp.float32)
    A = (u + u.T) / 2.0                   # symmetric, non-negative adjacency
    X = jax.random.normal(kx, (n, in_dim), jnp.float32)

    bound = 1.0 / (in_dim ** 0.5)         # torch nn.Linear default init range
    w = jax.random.uniform(kw, (1, in_dim), jnp.float32, -bound, bound)
    b = jax.random.uniform(kb, (1,), jnp.float32, -bound, bound)

    A_new, X_new, idx = graph_pool(A, X, w, b, k=k)
    jax.block_until_ready((A_new, X_new, idx))

    # --- correctness vs. pure-JAX reference of the PyTorch forward ----------
    A_ref, X_ref, idx_ref = graph_pool_reference(A, X, w, b, k)
    scores_ref = jax.nn.sigmoid((X @ w.reshape(-1, 1) + b.reshape(1, 1)) / 100.0)[:, 0]
    kk = int(k * n)

    assert A_new.shape == (kk, kk)
    assert X_new.shape == (kk, in_dim)
    assert idx.shape == (kk,)

    # Selection: compare as sorted sets (in-kernel VPU projection vs XLA matmul
    # can differ at ULP level, which would only reorder exact near-ties).
    assert bool(jnp.array_equal(jnp.sort(idx), jnp.sort(idx_ref)))
    # Gather/scale path, validated against the kernel's own idx (order-robust).
    assert bool(jnp.allclose(A_new, A[idx, :][:, idx], atol=1e-5, rtol=1e-5))
    assert bool(jnp.allclose(X_new, X[idx, :] * scores_ref[idx][:, None],
                             atol=1e-5, rtol=1e-5))
    # And against the full PyTorch-style reference.
    assert bool(jnp.allclose(A_new, A_ref, atol=1e-5, rtol=1e-5))
    assert bool(jnp.allclose(X_new, X_ref, atol=1e-5, rtol=1e-5))

    print("KERNEL_OK")
</pallas_src>

<mosaic_0001>
module attributes {stable_mosaic.version = 11 : i64} {
  func.func @_graph_pool_kernel(%arg0: memref<16x16xf32, #tpu.memory_space<vmem>>, %arg1: memref<16x32xf32, #tpu.memory_space<vmem>>, %arg2: memref<1x32xf32, #tpu.memory_space<vmem>>, %arg3: memref<1x1xf32, #tpu.memory_space<vmem>>, %arg4: memref<8x8xf32, #tpu.memory_space<vmem>>, %arg5: memref<8x32xf32, #tpu.memory_space<vmem>>, %arg6: memref<8x1xi32, #tpu.memory_space<vmem>>) attributes {dimension_semantics = [], scalar_prefetch = 0 : i64, scratch_operands = 0 : i64, tpu.core_type = #tpu.core_type<tc>} {
    %c0 = arith.constant 0 : index
    %c0_0 = arith.constant 0 : index
    %0 = vector.load %arg0[%c0, %c0_0] : memref<16x16xf32, #tpu.memory_space<vmem>>, vector<16x16xf32>
    %c0_1 = arith.constant 0 : index
    %c0_2 = arith.constant 0 : index
    %1 = vector.load %arg1[%c0_1, %c0_2] : memref<16x32xf32, #tpu.memory_space<vmem>>, vector<16x32xf32>
    %c0_3 = arith.constant 0 : index
    %c0_4 = arith.constant 0 : index
    %2 = vector.load %arg2[%c0_3, %c0_4] : memref<1x32xf32, #tpu.memory_space<vmem>>, vector<1x32xf32>
    %c0_5 = arith.constant 0 : index
    %c0_6 = arith.constant 0 : index
    %3 = vector.load %arg3[%c0_5, %c0_6] : memref<1x1xf32, #tpu.memory_space<vmem>>, vector<1x1xf32>
    %4 = vector.broadcast %2 : vector<1x32xf32> to vector<16x32xf32>
    %5 = arith.mulf %1, %4 : vector<16x32xf32>
    %cst = arith.constant dense<0.000000e+00> : vector<16xf32>
    %6 = vector.multi_reduction <add>, %5, %cst [1] : vector<16x32xf32> to vector<16xf32>
    %7 = vector.shape_cast %6 : vector<16xf32> to vector<16x1xf32>
    %8 = vector.broadcast %3 : vector<1x1xf32> to vector<16x1xf32>
    %9 = arith.addf %7, %8 : vector<16x1xf32>
    %cst_7 = arith.constant 0.00999999977 : f32
    %10 = vector.broadcast %cst_7 : f32 to vector<16x1xf32>
    %11 = arith.mulf %9, %10 : vector<16x1xf32>
    %12 = arith.negf %11 : vector<16x1xf32>
    %13 = math.exp %12 : vector<16x1xf32>
    %cst_8 = arith.constant 1.000000e+00 : f32
    %14 = vector.broadcast %cst_8 : f32 to vector<16x1xf32>
    %15 = arith.addf %14, %13 : vector<16x1xf32>
    %16 = arith.divf %14, %15 : vector<16x1xf32>
    %17 = tpu.transpose %16, [1, 0] : vector<16x1xf32> -> vector<1x16xf32>
    %18 = tpu.iota {dimensions = array<i32: 0>} : vector<16x16xi32>
    %19 = tpu.iota {dimensions = array<i32: 1>} : vector<16x16xi32>
    %20 = vector.broadcast %16 : vector<16x1xf32> to vector<16x16xf32>
    %21 = vector.broadcast %17 : vector<1x16xf32> to vector<16x16xf32>
    %22 = arith.cmpf ogt, %20, %21 : vector<16x16xf32>
    %23 = vector.broadcast %16 : vector<16x1xf32> to vector<16x16xf32>
    %24 = vector.broadcast %17 : vector<1x16xf32> to vector<16x16xf32>
    %25 = arith.cmpf oeq, %23, %24 : vector<16x16xf32>
    %26 = arith.cmpi slt, %18, %19 : vector<16x16xi32>
    %27 = arith.andi %25, %26 : vector<16x16xi1>
    %28 = arith.ori %22, %27 : vector<16x16xi1>
    %29 = arith.extui %28 : vector<16x16xi1> to vector<16x16xi32>
    %cst_9 = arith.constant dense<0> : vector<16xi32>
    %30 = vector.multi_reduction <add>, %29, %cst_9 [0] : vector<16x16xi32> to vector<16xi32>
    %31 = vector.shape_cast %30 : vector<16xi32> to vector<1x16xi32>
    %32 = tpu.iota {dimensions = array<i32: 0>} : vector<8x16xi32>
    %33 = vector.broadcast %31 : vector<1x16xi32> to vector<8x16xi32>
    %34 = arith.cmpi eq, %32, %33 : vector<8x16xi32>
    %35 = arith.extui %34 : vector<8x16xi1> to vector<8x16xi32>
    %36 = arith.sitofp %35 : vector<8x16xi32> to vector<8x16xf32>
    %37 = tpu.iota {dimensions = array<i32: 1>} : vector<8x16xi32>
    %c0_i32 = arith.constant 0 : i32
    %38 = vector.broadcast %c0_i32 : i32 to vector<8x16xi32>
    %39 = arith.select %34, %37, %38 : vector<8x16xi1>, vector<8x16xi32>
    %cst_10 = arith.constant dense<0> : vector<8xi32>
    %40 = vector.multi_reduction <add>, %39, %cst_10 [1] : vector<8x16xi32> to vector<8xi32>
    %41 = vector.shape_cast %40 : vector<8xi32> to vector<8x1xi32>
    %c0_11 = arith.constant 0 : index
    %c0_12 = arith.constant 0 : index
    %42 = vector.load %arg6[%c0_11, %c0_12] : memref<8x1xi32, #tpu.memory_space<vmem>>, vector<8x1xi32>
    tpu.vector_store %arg6[%c0_11, %c0_12], %41 {strides = array<i32>} : memref<8x1xi32, #tpu.memory_space<vmem>>, vector<8x1xi32>,
    %43 = vector.broadcast %16 : vector<16x1xf32> to vector<16x32xf32>
    %44 = arith.mulf %1, %43 : vector<16x32xf32>
    %45 = tpu.concatenate %0, %44 in 1 : vector<16x16xf32>, vector<16x32xf32> -> vector<16x48xf32>
    %cst_13 = arith.constant dense<0.000000e+00> : vector<8x48xf32>
    %46 = tpu.matmul %36, %45, %cst_13 {dimension_numbers = #tpu.dot_dimension_numbers<[1], [0], [0], [1], [0, 0, 1, 1], [], []>} : vector<8x16xf32>, vector<16x48xf32>, vector<8x48xf32> -> vector<8x48xf32>
    %47 = vector.extract_strided_slice %46 {offsets = [0, 0], sizes = [8, 16], strides = [1, 1]} : vector<8x48xf32> to vector<8x16xf32>
    %48 = vector.extract_strided_slice %46 {offsets = [0, 16], sizes = [8, 32], strides = [1, 1]} : vector<8x48xf32> to vector<8x32xf32>
    %c0_14 = arith.constant 0 : index
    %c0_15 = arith.constant 0 : index
    %49 = vector.load %arg5[%c0_14, %c0_15] : memref<8x32xf32, #tpu.memory_space<vmem>>, vector<8x32xf32>
    tpu.vector_store %arg5[%c0_14, %c0_15], %48 {strides = array<i32>} : memref<8x32xf32, #tpu.memory_space<vmem>>, vector<8x32xf32>,
    %cst_16 = arith.constant dense<0.000000e+00> : vector<8x8xf32>
    %50 = tpu.matmul %47, %36, %cst_16 {dimension_numbers = #tpu.dot_dimension_numbers<[1], [1], [0], [0], [0, 0, 1, 0], [], []>} : vector<8x16xf32>, vector<8x16xf32>, vector<8x8xf32> -> vector<8x8xf32>
    %c0_17 = arith.constant 0 : index
    %c0_18 = arith.constant 0 : index
    %51 = vector.load %arg4[%c0_17, %c0_18] : memref<8x8xf32, #tpu.memory_space<vmem>>, vector<8x8xf32>
    tpu.vector_store %arg4[%c0_17, %c0_18], %50 {strides = array<i32>} : memref<8x8xf32, #tpu.memory_space<vmem>>, vector<8x8xf32>,
    return
  }
}

</mosaic_0001>

<llo_original>
// kernel: graph_pool.1
$region0: #{graph_pool.1}
  #allocation0 [shape = 'u32[]', space=smem, size = 0x4, offset = 0x4, fixed_abs, tag = 'smem constant byte address 0x4 - core index']
  #allocation1 [shape = 'u32[144,128]{1,0:T(1,128)}', space=vmem, size = 0x12000, scoped, tag = 'internal scratch']
  #allocation2 [shape = 'f32[1,1]{1,0:T(1,128)S(1)}', space=vmem, size = 0x200, scoped, tag = 'scoped memory for graph_pool.1']
  %s0 = inlined_call_operand.hbm [shape: f32[16,16], index: 0, kind: input, shape index: {}]
  %s1 = inlined_call_operand.hbm [shape: f32[16,32], index: 1, kind: input, shape index: {}]
  %s2 = inlined_call_operand.vmem [shape: f32[1,32], index: 2, kind: input, shape index: {}]
  %s3 = inlined_call_operand.<no memory space> [shape: f32[1,1], index: 3, kind: input, shape index: {}]
  %s4 = inlined_call_operand.hbm [shape: f32[8,8], index: 4, kind: output, shape index: {0}]
  %s5 = inlined_call_operand.hbm [shape: f32[8,32], index: 5, kind: output, shape index: {1}]
  %s6 = inlined_call_operand.vmem [shape: s32[8,1], index: 6, kind: output, shape index: {2}]
  %7 = xla_tuple %s4, %s5, %s6
  %s8 = sld [smem:[#allocation0]]
  $region50: #{graph_pool.1} parent=0
    _
  %s10 = ssub.s32 1, %s8
  %s11 = scalar_select 0, %s10, %s8
  %v12 = vstv %s3
  %13 = vst [vmem:[#allocation2] sm:$0x1] %v12
  $region1: #{graph_pool.1} parent=0
    #allocation3 [shape = 'u8[8192]{0}', space=vmem, size = 0x2000, scoped, tag = 'input window, operand 0, single buffered']
    #allocation4 [shape = 's32[1]{0}', space=sflag, size = 0x4, scoped, tag = 'scoped memory for graph_pool.1']
    #allocation5 [shape = 's32[1]{0}', space=sflag, size = 0x4, scoped, tag = 'scoped memory for graph_pool.1']
    #allocation6 [shape = 'u8[8192]{0}', space=vmem, size = 0x2000, scoped, tag = 'input window, operand 1, single buffered']
    #allocation7 [shape = 's32[1]{0}', space=sflag, size = 0x4, scoped, tag = 'scoped memory for graph_pool.1']
    #allocation8 [shape = 'u8[4096]{0}', space=vmem, size = 0x1000, scoped, tag = 'output window, operand 0, single buffered']
    #allocation9 [shape = 'u8[4096]{0}', space=vmem, size = 0x1000, scoped, tag = 'output window, operand 1, single buffered']
    #allocation10 [shape = 's32[1]{0}', space=sflag, size = 0x4, scoped, tag = 'scoped memory for graph_pool.1']
    %14 = vsyncpa [#allocation4], 0
    %15 = vsyncpa [#allocation7], 0
    %16 = vsyncpa [#allocation5], 0
    %17 = vsyncpa [#allocation10], 0
    // Predicated region
    $region2: #{graph_pool.1} parent=1 // pred_check
      _
    $region3: #{graph_pool.1} parent=1 // pred_check_branch
      %19 = sbr.rel (0) target = $region5
    $region4: #{graph_pool.1} parent=1 // pred_region
      %s21 = ssub.s32 256, 256
      %22 = vsyncadd [#allocation4], %s21
      %s23 = sshll.u32 [#allocation3], 4
      %s24 = int_to_ptr.vmem [resolvable:$true] %s23
      %29 = dma.hbm_to_vmem [thread:$0]  %s0, 256, %s24, [#allocation4], 128, 128, 8
    $region5: #{graph_pool.1} parent=1 // pred_fallthru
      _
    // Predicated region
    $region6: #{graph_pool.1} parent=1 // pred_check
      _
    $region7: #{graph_pool.1} parent=1 // pred_check_branch
      %31 = sbr.rel (0) target = $region9
    $region8: #{graph_pool.1} parent=1 // pred_region
      %s33 = ssub.s32 256, 256
      %34 = vsyncadd [#allocation7], %s33
      %s35 = sshll.u32 [#allocation6], 4
      %s36 = int_to_ptr.vmem [resolvable:$true] %s35
      %41 = dma.hbm_to_vmem [thread:$0]  %s1, 256, %s36, [#allocation7], 128, 128, 8
    $region9: #{graph_pool.1} parent=1 // pred_fallthru
      _
    // Predicated region
    $region10: #{graph_pool.1} parent=1 // pred_check
      _
    $region11: #{graph_pool.1} parent=1 // pred_check_branch
      %43 = sbr.rel (0) target = $region13
    $region12: #{graph_pool.1} parent=1 // pred_region
      _
    $region13: #{graph_pool.1} parent=1 // pred_fallthru
      _
    // Predicated region
    $region14: #{graph_pool.1} parent=1 // pred_check
      _
    $region15: #{graph_pool.1} parent=1 // pred_check_branch
      %45 = sbr.rel (0) target = $region17
    $region16: #{graph_pool.1} parent=1 // pred_region
      _
    $region17: #{graph_pool.1} parent=1 // pred_fallthru
      _
    // Predicated region
    $region18: #{graph_pool.1} parent=1 // pred_check
      _
    $region19: #{graph_pool.1} parent=1 // pred_check_branch
      %47 = sbr.rel (0) target = $region21
    $region20: #{graph_pool.1} parent=1 // pred_region
      %48 = dma.done [#allocation4], 256
    $region21: #{graph_pool.1} parent=1 // pred_fallthru
      _
    // Predicated region
    $region22: #{graph_pool.1} parent=1 // pred_check
      _
    $region23: #{graph_pool.1} parent=1 // pred_check_branch
      %50 = sbr.rel (0) target = $region25
    $region24: #{graph_pool.1} parent=1 // pred_region
      %51 = dma.done [#allocation7], 256
    $region25: #{graph_pool.1} parent=1 // pred_fallthru
      _
    %v52 = vld [vmem:[#allocation3] sm:$0xff]
    %v53 = vld [vmem:[#allocation3 + $0x8] sm:$0xff]
    %v54 = vld [vmem:[#allocation6] sm:$0xff]
    %v55 = vld [vmem:[#allocation6 + $0x8] sm:$0xff]
    %v56 = vld [vmem:[%s2] sm:$0x1]
    %v57 = vld [vmem:[#allocation2] sm:$0x1]
    %v59 = vlaneseq
    %v60 = vshrl.u32 %v59, 7
    %v61 = vsub.s32 0, %v60
    %v62 = vrot.slane %v56, %v61
    %v64 = vmul.f32 %v54, %v62
    %v65 = vmul.f32 %v55, %v62
    %vm66 = vcmask 261120
    %v67 = vsel %vm66, %v64, 0.0
    %68 = vadd.xlane.f32.xlu0 %v67
    %v69 = vpop.xlane.xlu0 %68
    %v70 = vsel %vm66, %v65, 0.0
    %71 = vadd.xlane.f32.xlu0 %v70
    %v72 = vpop.xlane.xlu0 %71
    %v74 = vlaneseq
    %v75 = vshrl.u32 %v74, 7
    %v76 = vsub.s32 0, %v75
    %v77 = vrot.slane %v57, %v76
    %v79 = vadd.f32 %v69, %v77
    %v80 = vadd.f32 %v72, %v77
    %v81 = vmul.f32 %v79, 0.01
    %v82 = vmul.f32 %v80, 0.01
    %v83 = vxor.u32 %v81, 2147483648
    %v84 = vxor.u32 %v82, 2147483648
    %v85 = vmul.f32 %v83, 1.442695
    %v86 = vpow.pop %v85
    %v87 = vmul.f32 %v84, 1.442695
    %v88 = vpow.pop %v87
    %v89 = vadd.f32 %v86, 1.0
    %v90 = vadd.f32 %v88, 1.0
    %v91 = vrcp.pop %v89
    %v92 = vmul.f32 1.0, %v91
    %v93 = vrcp.pop %v90
    %v94 = vmul.f32 1.0, %v93
    %95 = vxpose.xlu0.b32.start [1/16] %v92, 128
    %96 = vxpose.xlu0.b32.cont [2/16] %v94, 128
    %97 = vxpose.xlu0.b32.cont [3/16] 0.0, 128
    %98 = vxpose.xlu0.b32.cont [4/16] 0.0, 128
    %99 = vxpose.xlu0.b32.cont [5/16] 0.0, 128
    %100 = vxpose.xlu0.b32.cont [6/16] 0.0, 128
    %101 = vxpose.xlu0.b32.cont [7/16] 0.0, 128
    %102 = vxpose.xlu0.b32.cont [8/16] 0.0, 128
    %103 = vxpose.xlu0.b32.cont [9/16] 0.0, 128
    %104 = vxpose.xlu0.b32.cont [10/16] 0.0, 128
    %105 = vxpose.xlu0.b32.cont [11/16] 0.0, 128
    %106 = vxpose.xlu0.b32.cont [12/16] 0.0, 128
    %107 = vxpose.xlu0.b32.cont [13/16] 0.0, 128
    %108 = vxpose.xlu0.b32.cont [14/16] 0.0, 128
    %109 = vxpose.xlu0.b32.cont [15/16] 0.0, 128
    %110 = vxpose.xlu0.b32.end [16/16] 0.0, 128
    %v111 = vpop.trf.xlu0
    %v112 = vpop.trf.xlu0
    %v113 = vpop.trf.xlu0
    %v114 = vpop.trf.xlu0
    %v115 = vpop.trf.xlu0
    %v116 = vpop.trf.xlu0
    %v117 = vpop.trf.xlu0
    %v118 = vpop.trf.xlu0
    %v119 = vpop.trf.xlu0
    %v120 = vpop.trf.xlu0
    %v121 = vpop.trf.xlu0
    %v122 = vpop.trf.xlu0
    %v123 = vpop.trf.xlu0
    %v124 = vpop.trf.xlu0
    %v125 = vpop.trf.xlu0
    %v126 = vpop.trf.xlu0
    %v127 = vlaneseq
    %v128 = vshrl.u32 %v127, 7
    %v129 = vadd.s32 %v128, 8
    %v130 = vlaneseq
    %v131 = vand.u32 %v130, 127
    %133 = vset.pattern.permute.xlu0 0
    %134 = vperm.xlu0 %133, %v92
    %v135 = vpop.permute.xlu0 %134
    %138 = vset.pattern.permute.xlu0 0
    %139 = vperm.xlu0 %138, %v94
    %v140 = vpop.permute.xlu0 %139
    %v142 = vlaneseq
    %v143 = vshrl.u32 %v142, 7
    %v144 = vsub.s32 0, %v143
    %v145 = vrot.slane %v111, %v144
    %vm146 = vcmp.gt.f32.partialorder %v135, %v145
    %vm147 = vcmp.gt.f32.partialorder %v140, %v145
    %vm148 = vcmp.eq.f32.partialorder %v135, %v145
    %vm149 = vcmp.eq.f32.partialorder %v140, %v145
    %vm150 = vcmp.lt.s32.totalorder %v128, %v131
    %vm151 = vcmp.lt.s32.totalorder %v129, %v131
    %vm152 = vmand %vm148, %vm150
    %vm153 = vmand %vm149, %vm151
    %vm154 = vmor %vm146, %vm152
    %vm155 = vmor %vm147, %vm153
    %v156 = vsel %vm154, 1, 0
    %v157 = vsel %vm155, 1, 0
    %vm158 = vcmask 130048
    %v159 = vsel %vm158, %v156, 0
    %v160 = vsel %vm158, %v157, 0
    %v161 = vadd.s32 %v159, %v160
    %v162 = vrot.slane %v161, 4
    %v163 = vadd.s32 %v161, %v162
    %v164 = vrot.slane %v163, 2
    %v165 = vadd.s32 %v163, %v164
    %v166 = vrot.slane %v165, 1
    %v167 = vadd.s32 %v165, %v166
    %vm168 = vcmp.eq.s32.totalorder %v128, %v167
    %v169 = vsel %vm168, 1, 0
    %v170 = vcvt.s32.f32 %v169
    %v171 = vsel %vm168, %v131, 0
    %v172 = vsel %vm158, %v171, 0
    %v173 = vand.u32 %v172, 65535
    %v174 = vshrl.u32 %v172, 16
    %v175 = vcvt.s32.f32 %v173
    %v176 = vcvt.s32.f32 %v174
    %177 = vadd.xlane.f32.xlu0 %v175
    %v178 = vpop.xlane.xlu0 %177
    %179 = vadd.xlane.f32.xlu0 %v176
    %v180 = vpop.xlane.xlu0 %179
    %v181 = vcvt.f32.s32 %v178
    %v182 = vcvt.f32.s32 %v180
    %v183 = vshll.u32 %v182, 16
    %v184 = vadd.s32 %v183, %v181
    %vm185 = vcmask 7168
    %186 = vst.msk [vmem:[%s6] sm:$0xff] %vm185, %v184
    %v187 = vmul.f32 %v54, %v135
    %v188 = vmul.f32 %v55, %v140
    %191 = vrot.lane.b32.xlu0 %v187, 16
    %v192 = vpop.permute.xlu0 %191
    %193 = vrot.lane.b32.xlu0 %v188, 16
    %v194 = vpop.permute.xlu0 %193
    %v197 = vsel %vm158, %v52, %v192
    %v198 = vsel %vm158, %v53, %v194
    %v200 = vsel %vm158, %v170, 0
    %202 = vmatprep.subr.mxu0 0.0
    %203 = vmatpush1.msra.mxu0 %v197
    %204 = vmatprep.subr.mxu0 0.0
    %205 = vmatpush1.msra.mxu0 %v198
    %206 = vmatprep.subr.mxu0 0.0
    %207 = vmatpush1.msra.mxu0 0.0
    %208 = vmatprep.subr.mxu0 0.0
    %209 = vmatpush1.msra.mxu0 0.0
    %210 = vmatprep.subr.mxu0 0.0
    %211 = vmatpush1.msra.mxu0 0.0
    %212 = vmatprep.subr.mxu0 0.0
    %213 = vmatpush1.msra.mxu0 0.0
    %214 = vmatprep.subr.mxu0 0.0
    %215 = vmatpush1.msra.mxu0 0.0
    %216 = vmatprep.subr.mxu0 0.0
    %217 = vmatpush1.msra.mxu0 0.0
    %218 = vmatprep.subr.mxu0 0.0
    %219 = vmatpush1.msra.mxu0 0.0
    %220 = vmatprep.subr.mxu0 0.0
    %221 = vmatpush1.msra.mxu0 0.0
    %222 = vmatprep.subr.mxu0 0.0
    %223 = vmatpush1.msra.mxu0 0.0
    %224 = vmatprep.subr.mxu0 0.0
    %225 = vmatpush1.msra.mxu0 0.0
    %226 = vmatprep.subr.mxu0 0.0
    %227 = vmatpush1.msra.mxu0 0.0
    %228 = vmatprep.subr.mxu0 0.0
    %229 = vmatpush1.msra.mxu0 0.0
    %230 = vmatprep.subr.mxu0 0.0
    %231 = vmatpush1.msra.mxu0 0.0
    %232 = vmatprep.subr.mxu0 0.0
    %233 = vmatpush1.msra.mxu0 0.0
    %234 = vmatprep.subr.mxu0 0.0
    %235 = vmatpush1.msra.mxu0 0.0
    %236 = vmatprep.subr.mxu0 0.0
    %237 = vmatpush1.msra.mxu0 0.0
    %238 = vmatprep.subr.mxu0 0.0
    %239 = vmatpush1.msra.mxu0 0.0
    %240 = vmatprep.subr.mxu0 0.0
    %241 = vmatpush1.msra.mxu0 0.0
    %242 = vmatprep.subr.mxu0 0.0
    %243 = vmatpush1.msra.mxu0 0.0
    %244 = vmatprep.subr.mxu0 0.0
    %245 = vmatpush1.msra.mxu0 0.0
    %246 = vmatprep.subr.mxu0 0.0
    %247 = vmatpush1.msra.mxu0 0.0
    %248 = vmatprep.subr.mxu0 0.0
    %249 = vmatpush1.msra.mxu0 0.0
    %250 = vmatprep.subr.mxu0 0.0
    %251 = vmatpush1.msra.mxu0 0.0
    %252 = vmatprep.subr.mxu0 0.0
    %253 = vmatpush1.msra.mxu0 0.0
    %254 = vmatprep.subr.mxu0 0.0
    %255 = vmatpush1.msra.mxu0 0.0
    %256 = vmatprep.subr.mxu0 0.0
    %257 = vmatpush1.msra.mxu0 0.0
    %258 = vmatprep.subr.mxu0 0.0
    %259 = vmatpush1.msra.mxu0 0.0
    %260 = vmatprep.subr.mxu0 0.0
    %261 = vmatpush1.msra.mxu0 0.0
    %262 = vmatprep.subr.mxu0 0.0
    %263 = vmatpush1.msra.mxu0 0.0
    %264 = vmatprep.subr.mxu0 0.0
    %265 = vmatpush1.msra.mxu0 0.0
    %266 = vmatprep.mubr.f32.mxu0 0.0
    %267 = vmatmul.mubr.f32.gmra.mrb[0].mxu0 %v200
    %v268 = vpop.f32.mrb[0].mxu0
    %v269 = vadd.f32 0.0, %v268
    %v270 = vpop.f32.mrb[0].mxu0
    %271 = vdwg.mxu0
    %273 = vrot.lane.b32.xlu0 %v269, 112
    %v274 = vpop.permute.xlu0 %273
    %276 = vst.msk [vmem:[#allocation9] sm:$0xff] %vm66, %v274
    %v277 = vsel %vm158, %v269, 0
    %279 = vmatprep.subr.mxu0 0.0
    %280 = vmatpush1.xpose.msra.mxu0 %v200
    %281 = vmatprep.subr.mxu0 0.0
    %282 = vmatpush1.xpose.msra.mxu0 0.0
    %283 = vmatprep.subr.mxu0 0.0
    %284 = vmatpush1.xpose.msra.mxu0 0.0
    %285 = vmatprep.subr.mxu0 0.0
    %286 = vmatpush1.xpose.msra.mxu0 0.0
    %287 = vmatprep.subr.mxu0 0.0
    %288 = vmatpush1.xpose.msra.mxu0 0.0
    %289 = vmatprep.subr.mxu0 0.0
    %290 = vmatpush1.xpose.msra.mxu0 0.0
    %291 = vmatprep.subr.mxu0 0.0
    %292 = vmatpush1.xpose.msra.mxu0 0.0
    %293 = vmatprep.subr.mxu0 0.0
    %294 = vmatpush1.xpose.msra.mxu0 0.0
    %295 = vmatprep.subr.mxu0 0.0
    %296 = vmatpush1.xpose.msra.mxu0 0.0
    %297 = vmatprep.subr.mxu0 0.0
    %298 = vmatpush1.xpose.msra.mxu0 0.0
    %299 = vmatprep.subr.mxu0 0.0
    %300 = vmatpush1.xpose.msra.mxu0 0.0
    %301 = vmatprep.subr.mxu0 0.0
    %302 = vmatpush1.xpose.msra.mxu0 0.0
    %303 = vmatprep.subr.mxu0 0.0
    %304 = vmatpush1.xpose.msra.mxu0 0.0
    %305 = vmatprep.subr.mxu0 0.0
    %306 = vmatpush1.xpose.msra.mxu0 0.0
    %307 = vmatprep.subr.mxu0 0.0
    %308 = vmatpush1.xpose.msra.mxu0 0.0
    %309 = vmatprep.subr.mxu0 0.0
    %310 = vmatpush1.xpose.msra.mxu0 0.0
    %311 = vmatprep.subr.mxu0 0.0
    %312 = vmatpush1.xpose.msra.mxu0 0.0
    %313 = vmatprep.subr.mxu0 0.0
    %314 = vmatpush1.xpose.msra.mxu0 0.0
    %315 = vmatprep.subr.mxu0 0.0
    %316 = vmatpush1.xpose.msra.mxu0 0.0
    %317 = vmatprep.subr.mxu0 0.0
    %318 = vmatpush1.xpose.msra.mxu0 0.0
    %319 = vmatprep.subr.mxu0 0.0
    %320 = vmatpush1.xpose.msra.mxu0 0.0
    %321 = vmatprep.subr.mxu0 0.0
    %322 = vmatpush1.xpose.msra.mxu0 0.0
    %323 = vmatprep.subr.mxu0 0.0
    %324 = vmatpush1.xpose.msra.mxu0 0.0
    %325 = vmatprep.subr.mxu0 0.0
    %326 = vmatpush1.xpose.msra.mxu0 0.0
    %327 = vmatprep.subr.mxu0 0.0
    %328 = vmatpush1.xpose.msra.mxu0 0.0
    %329 = vmatprep.subr.mxu0 0.0
    %330 = vmatpush1.xpose.msra.mxu0 0.0
    %331 = vmatprep.subr.mxu0 0.0
    %332 = vmatpush1.xpose.msra.mxu0 0.0
    %333 = vmatprep.subr.mxu0 0.0
    %334 = vmatpush1.xpose.msra.mxu0 0.0
    %335 = vmatprep.subr.mxu0 0.0
    %336 = vmatpush1.xpose.msra.mxu0 0.0
    %337 = vmatprep.subr.mxu0 0.0
    %338 = vmatpush1.xpose.msra.mxu0 0.0
    %339 = vmatprep.subr.mxu0 0.0
    %340 = vmatpush1.xpose.msra.mxu0 0.0
    %341 = vmatprep.subr.mxu0 0.0
    %342 = vmatpush1.xpose.msra.mxu0 0.0
    %343 = vmatprep.mubr.f32.mxu0 0.0
    %344 = vmatmul.mubr.f32.gmra.mrb[0].mxu0 %v277
    %v345 = vpop.f32.mrb[0].mxu0
    %v346 = vadd.f32 0.0, %v345
    %v347 = vpop.f32.mrb[0].mxu0
    %348 = vdwg.mxu0
    %vm349 = vcmask 64512
    %350 = vst.msk [vmem:[#allocation8] sm:$0xff] %vm349, %v346
    // Predicated region
    $region26: #{graph_pool.1} parent=1 // pred_check
      _
    $region27: #{graph_pool.1} parent=1 // pred_check_branch
      %352 = sbr.rel (0) target = $region29
    $region28: #{graph_pool.1} parent=1 // pred_region
      %s354 = ssub.s32 128, 128
      %355 = vsyncadd [#allocation5], %s354
      %s357 = sshll.u32 [#allocation8], 4
      %s358 = int_to_ptr.vmem [resolvable:$true] %s357
      %360 = dma.vmem_to_hbm [thread:$0]  %s358, 128, %s4, [#allocation5]
    $region29: #{graph_pool.1} parent=1 // pred_fallthru
      _
    // Predicated region
    $region30: #{graph_pool.1} parent=1 // pred_check
      _
    $region31: #{graph_pool.1} parent=1 // pred_check_branch
      %362 = sbr.rel (0) target = $region33
    $region32: #{graph_pool.1} parent=1 // pred_region
      %s364 = ssub.s32 128, 128
      %365 = vsyncadd [#allocation10], %s364
      %s367 = sshll.u32 [#allocation9], 4
      %s368 = int_to_ptr.vmem [resolvable:$true] %s367
      %370 = dma.vmem_to_hbm [thread:$0]  %s368, 128, %s5, [#allocation10]
    $region33: #{graph_pool.1} parent=1 // pred_fallthru
      _
    // Predicated region
    $region34: #{graph_pool.1} parent=1 // pred_check
      _
    $region35: #{graph_pool.1} parent=1 // pred_check_branch
      %372 = sbr.rel (0) target = $region37
    $region36: #{graph_pool.1} parent=1 // pred_region
      _
    $region37: #{graph_pool.1} parent=1 // pred_fallthru
      _
    // Predicated region
    $region38: #{graph_pool.1} parent=1 // pred_check
      _
    $region39: #{graph_pool.1} parent=1 // pred_check_branch
      %374 = sbr.rel (0) target = $region41
    $region40: #{graph_pool.1} parent=1 // pred_region
      %375 = dma.done [#allocation5], 128
    $region41: #{graph_pool.1} parent=1 // pred_fallthru
      _
    // Predicated region
    $region42: #{graph_pool.1} parent=1 // pred_check
      _
    $region43: #{graph_pool.1} parent=1 // pred_check_branch
      %377 = sbr.rel (0) target = $region45
    $region44: #{graph_pool.1} parent=1 // pred_region
      %378 = dma.done [#allocation10], 128
    $region45: #{graph_pool.1} parent=1 // pred_fallthru
      _
    // Predicated region
    $region46: #{graph_pool.1} parent=1 // pred_check
      _
    $region47: #{graph_pool.1} parent=1 // pred_check_branch
      %380 = sbr.rel (0) target = $region49
    $region48: #{graph_pool.1} parent=1 // pred_region
      _
    $region49: #{graph_pool.1} parent=1 // pred_fallthru
      _
    %381 = vsyncpa [#allocation4], 1
    %382 = vsyncpa [#allocation7], 1
    %383 = vsyncpa [#allocation5], 1
    %384 = vsyncpa [#allocation10], 1

</llo_original>
